<compile_context>
chip_gen: v5e
topology: v5e:2x2
jax: 0.10.0
libtpu: 0.0.40
codegen_flags: <defaults>
</compile_context>

<pallas_src>
import math
import jax
import jax.numpy as jnp
from jax.experimental import pallas as pl
from jax.experimental.pallas import tpu as pltpu


def _aft_simple_kernel(x_ref, wqkv_ref, bqkv_ref, wp_ref, bp_ref, o_ref):
    h = wqkv_ref.shape[1] // 3            # static hidden dim

    # Fused QKV projection on the MXU: bf16 inputs, f32 accumulate.
    x = x_ref[...].astype(jnp.bfloat16)
    qkv = jnp.dot(x, wqkv_ref[...], preferred_element_type=jnp.float32)
    qkv = qkv + bqkv_ref[...]             # f32 bias add (broadcast over rows)

    q = qkv[:, 0 * h:1 * h]
    k = qkv[:, 1 * h:2 * h]
    v = qkv[:, 2 * h:3 * h]

    # Numerically stable softmax over the hidden (lane) dim, all in f32.
    k_max = jnp.max(k, axis=-1, keepdims=True)
    k_exp = jnp.exp(k - k_max)
    denom = jnp.sum(k_exp, axis=-1, keepdims=True)
    k_soft = k_exp * pl.reciprocal(denom, approx=True)

    y = jax.nn.sigmoid(q) * k_soft * v

    # Output projection back to (lane-padded) dim; bf16 MXU, f32 accumulate.
    out = jnp.dot(y.astype(wp_ref.dtype), wp_ref[...],
                  preferred_element_type=jnp.float32) + bp_ref[...]
    o_ref[...] = out.astype(o_ref.dtype)


def _pick_row_tile(M, dim, dim_p, hidden, vmem_budget=24 * 1024 * 1024, cap=1024):
    """Largest tm <= cap that is a multiple of 8, divides M, yields grid >= 2,
    and keeps double-buffered tiles + resident weights inside the VMEM budget."""
    # Resident (per-step-constant) operands: Wqkv/bqkv/Wp/bp (double-buffered).
    weight_bytes = 2 * (dim * 3 * hidden * 2 + 3 * hidden * 4
                        + hidden * dim_p * 2 + dim_p * 4)

    def fits(tm):
        tile_bytes = 2 * (tm * dim * 4 + tm * dim_p * 4)   # x + out, 2 buffers each
        return weight_bytes + tile_bytes <= vmem_budget

    best = None
    t = 8
    while t <= min(M, cap):
        if M % t == 0 and M // t >= 2 and fits(t):
            best = t
        t += 8
    if best is None:
        return M                          # single full block (block == full array)
    return best


def aft_simple_forward(x, params, *, row_tile=None):
    """x: (B, T, dim) float32.  params: dict of weights/biases (see init)."""
    B, T, dim = x.shape
    hidden = params["wq"].shape[1]
    M = B * T

    # Fuse Q/K/V projection weights into one (dim, 3*hidden) bf16 matrix.
    w_qkv = jnp.concatenate(
        [params["wq"], params["wk"], params["wv"]], axis=1).astype(jnp.bfloat16)
    b_qkv = jnp.concatenate(
        [params["bq"], params["bk"], params["bv"]], axis=1).astype(jnp.float32)

    # Lane-dense output: zero-pad the projection columns to a multiple of 128.
    dim_p = ((dim + 127) // 128) * 128
    wp = params["wp"]
    bp = params["bp"]
    if dim_p != dim:
        wp = jnp.pad(wp, ((0, 0), (0, dim_p - dim)))
        bp = jnp.pad(bp, ((0, 0), (0, dim_p - dim)))
    wp = wp.astype(jnp.bfloat16)
    bp = bp.astype(jnp.float32)

    x2 = x.reshape(M, dim)                # keep f32 rows; cast to bf16 in-kernel

    tm = _pick_row_tile(M, dim, dim_p, hidden) if row_tile is None else row_tile
    assert M % tm == 0, "row tile must divide B*T"
    assert tm % 8 == 0 or tm == M, "row tile must be a multiple of 8 sublanes"

    full = lambda i: (0, 0)               # weights / biases: same block every step

    out2 = pl.pallas_call(
        _aft_simple_kernel,
        out_shape=jax.ShapeDtypeStruct((M, dim_p), x.dtype),
        grid_spec=pltpu.PrefetchScalarGridSpec(
            num_scalar_prefetch=0,
            grid=(M // tm,),
            in_specs=[
                pl.BlockSpec((tm, dim), lambda i: (i, 0)),        # x rows
                pl.BlockSpec((dim, 3 * hidden), full),            # fused Wqkv
                pl.BlockSpec((1, 3 * hidden), full),              # fused bqkv
                pl.BlockSpec((hidden, dim_p), full),              # Wp (lane-padded)
                pl.BlockSpec((1, dim_p), full),                   # bp (lane-padded)
            ],
            out_specs=pl.BlockSpec((tm, dim_p), lambda i: (i, 0)),
        ),
        compiler_params=pltpu.CompilerParams(
            dimension_semantics=("parallel",),
            vmem_limit_bytes=32 * 1024 * 1024,
        ),
    )(x2, w_qkv, b_qkv, wp, bp)

    if dim_p != dim:
        out2 = out2[:, :dim]
    return out2.reshape(B, T, dim)


def init_aft_simple_params(key, dim, hidden_dim):
    """Deterministic init mimicking PyTorch Linear default (uniform +-1/sqrt(fan_in)).
    Weights stored transposed: (in_features, out_features)."""
    ks = jax.random.split(key, 8)

    def lin(kw, kb, fan_in, fan_out):
        bound = 1.0 / math.sqrt(fan_in)
        w = jax.random.uniform(kw, (fan_in, fan_out), jnp.float32, -bound, bound)
        b = jax.random.uniform(kb, (1, fan_out), jnp.float32, -bound, bound)
        return w, b

    wq, bq = lin(ks[0], ks[1], dim, hidden_dim)
    wk, bk = lin(ks[2], ks[3], dim, hidden_dim)
    wv, bv = lin(ks[4], ks[5], dim, hidden_dim)
    wp, bp = lin(ks[6], ks[7], hidden_dim, dim)
    return dict(wq=wq, bq=bq, wk=wk, bk=bk, wv=wv, bv=bv, wp=wp, bp=bp)


def aft_simple_reference(x, p):
    """Pure-JAX f32 reference matching the PyTorch forward exactly."""
    q = x @ p["wq"] + p["bq"]
    k = x @ p["wk"] + p["bk"]
    v = x @ p["wv"] + p["bv"]
    y = jax.nn.sigmoid(q) * jax.nn.softmax(k, axis=-1) * v
    return y @ p["wp"] + p["bp"]


if __name__ == "__main__":
    B, T, dim, hidden_dim = 2, 8, 32, 64   # max_seqlen=8, dim=32, hidden_dim=64
    key = jax.random.PRNGKey(0)
    kx, kp = jax.random.split(key)
    x = jax.random.normal(kx, (B, T, dim), jnp.float32)
    params = init_aft_simple_params(kp, dim, hidden_dim)

    out = aft_simple_forward(x, params)
    out = jax.block_until_ready(out)

    ref = aft_simple_reference(x, params)
    assert out.shape == (B, T, dim)
    # bf16 MXU inputs + approx reciprocal -> relaxed (but still tight) tolerance.
    assert jnp.allclose(out, ref, atol=2e-2, rtol=2e-2), "mismatch vs reference"
    print("KERNEL_OK")
</pallas_src>

<mosaic_0001>
module attributes {stable_mosaic.version = 11 : i64} {
  func.func @_aft_simple_kernel(%arg0: i32, %arg1: memref<8x32xf32, #tpu.memory_space<vmem>>, %arg2: memref<32x192xbf16, #tpu.memory_space<vmem>>, %arg3: memref<1x192xf32, #tpu.memory_space<vmem>>, %arg4: memref<64x128xbf16, #tpu.memory_space<vmem>>, %arg5: memref<1x128xf32, #tpu.memory_space<vmem>>, %arg6: memref<8x128xf32, #tpu.memory_space<vmem>>) attributes {dimension_semantics = [#tpu.dimension_semantics<parallel>], iteration_bounds = array<i64: 2>, scalar_prefetch = 0 : i64, scratch_operands = 0 : i64, tpu.core_type = #tpu.core_type<tc>, window_params = [{transform_indices = @transform_0, window_bounds = array<i64: 8, 32>}, {pipeline_mode = #tpu.pipeline_mode<synchronous>, transform_indices = @transform_1, window_bounds = array<i64: 32, 192>}, {pipeline_mode = #tpu.pipeline_mode<synchronous>, transform_indices = @transform_2, window_bounds = array<i64: 1, 192>}, {pipeline_mode = #tpu.pipeline_mode<synchronous>, transform_indices = @transform_3, window_bounds = array<i64: 64, 128>}, {pipeline_mode = #tpu.pipeline_mode<synchronous>, transform_indices = @transform_4, window_bounds = array<i64: 1, 128>}, {transform_indices = @transform_5, window_bounds = array<i64: 8, 128>}]} {
    %c0 = arith.constant 0 : index
    %c0_0 = arith.constant 0 : index
    %0 = vector.load %arg1[%c0, %c0_0] : memref<8x32xf32, #tpu.memory_space<vmem>>, vector<8x32xf32>
    %1 = arith.truncf %0 : vector<8x32xf32> to vector<8x32xbf16>
    %c0_1 = arith.constant 0 : index
    %c0_2 = arith.constant 0 : index
    %2 = vector.load %arg2[%c0_1, %c0_2] : memref<32x192xbf16, #tpu.memory_space<vmem>>, vector<32x192xbf16>
    %cst = arith.constant dense<0.000000e+00> : vector<8x192xf32>
    %3 = tpu.matmul %1, %2, %cst {dimension_numbers = #tpu.dot_dimension_numbers<[1], [0], [0], [1], [0, 0, 1, 1], [], []>} : vector<8x32xbf16>, vector<32x192xbf16>, vector<8x192xf32> -> vector<8x192xf32>
    %c0_3 = arith.constant 0 : index
    %c0_4 = arith.constant 0 : index
    %4 = vector.load %arg3[%c0_3, %c0_4] : memref<1x192xf32, #tpu.memory_space<vmem>>, vector<1x192xf32>
    %5 = vector.broadcast %4 : vector<1x192xf32> to vector<8x192xf32>
    %6 = arith.addf %3, %5 : vector<8x192xf32>
    %7 = vector.extract_strided_slice %6 {offsets = [0, 0], sizes = [8, 64], strides = [1, 1]} : vector<8x192xf32> to vector<8x64xf32>
    %8 = vector.extract_strided_slice %6 {offsets = [0, 64], sizes = [8, 64], strides = [1, 1]} : vector<8x192xf32> to vector<8x64xf32>
    %9 = vector.extract_strided_slice %6 {offsets = [0, 128], sizes = [8, 64], strides = [1, 1]} : vector<8x192xf32> to vector<8x64xf32>
    %cst_5 = arith.constant dense<0xFF800000> : vector<8xf32>
    %10 = vector.multi_reduction <maximumf>, %8, %cst_5 [1] : vector<8x64xf32> to vector<8xf32>
    %11 = vector.shape_cast %10 : vector<8xf32> to vector<8x1xf32>
    %12 = vector.broadcast %11 : vector<8x1xf32> to vector<8x64xf32>
    %13 = arith.subf %8, %12 : vector<8x64xf32>
    %14 = math.exp %13 : vector<8x64xf32>
    %cst_6 = arith.constant dense<0.000000e+00> : vector<8xf32>
    %15 = vector.multi_reduction <add>, %14, %cst_6 [1] : vector<8x64xf32> to vector<8xf32>
    %16 = vector.shape_cast %15 : vector<8xf32> to vector<8x1xf32>
    %17 = tpu.reciprocal %16 {approx = true} : vector<8x1xf32> -> vector<8x1xf32>
    %18 = vector.broadcast %17 : vector<8x1xf32> to vector<8x64xf32>
    %19 = arith.mulf %14, %18 : vector<8x64xf32>
    %20 = arith.negf %7 : vector<8x64xf32>
    %21 = math.exp %20 : vector<8x64xf32>
    %cst_7 = arith.constant 1.000000e+00 : f32
    %22 = vector.broadcast %cst_7 : f32 to vector<8x64xf32>
    %23 = arith.addf %22, %21 : vector<8x64xf32>
    %24 = arith.divf %22, %23 : vector<8x64xf32>
    %25 = arith.mulf %24, %19 : vector<8x64xf32>
    %26 = arith.mulf %25, %9 : vector<8x64xf32>
    %27 = arith.truncf %26 : vector<8x64xf32> to vector<8x64xbf16>
    %c0_8 = arith.constant 0 : index
    %c0_9 = arith.constant 0 : index
    %28 = vector.load %arg4[%c0_8, %c0_9] : memref<64x128xbf16, #tpu.memory_space<vmem>>, vector<64x128xbf16>
    %cst_10 = arith.constant dense<0.000000e+00> : vector<8x128xf32>
    %29 = tpu.matmul %27, %28, %cst_10 {dimension_numbers = #tpu.dot_dimension_numbers<[1], [0], [0], [1], [0, 0, 1, 1], [], []>} : vector<8x64xbf16>, vector<64x128xbf16>, vector<8x128xf32> -> vector<8x128xf32>
    %c0_11 = arith.constant 0 : index
    %c0_12 = arith.constant 0 : index
    %30 = vector.load %arg5[%c0_11, %c0_12] : memref<1x128xf32, #tpu.memory_space<vmem>>, vector<1x128xf32>
    %31 = vector.broadcast %30 : vector<1x128xf32> to vector<8x128xf32>
    %32 = arith.addf %29, %31 : vector<8x128xf32>
    %c0_13 = arith.constant 0 : index
    %c0_14 = arith.constant 0 : index
    %33 = vector.load %arg6[%c0_13, %c0_14] : memref<8x128xf32, #tpu.memory_space<vmem>>, vector<8x128xf32>
    tpu.vector_store %arg6[%c0_13, %c0_14], %32 {strides = array<i32>} : memref<8x128xf32, #tpu.memory_space<vmem>>, vector<8x128xf32>,
    return
  }
  func.func @transform_0(%arg0: i32) -> (i32, i32) {
    %c0_i32 = arith.constant 0 : i32
    %c0_i32_0 = arith.constant 0 : i32
    return %arg0, %c0_i32 : i32, i32
  }
  func.func @transform_1(%arg0: i32) -> (i32, i32) {
    %c0_i32 = arith.constant 0 : i32
    %c0_i32_0 = arith.constant 0 : i32
    %c0_i32_1 = arith.constant 0 : i32
    return %c0_i32, %c0_i32_0 : i32, i32
  }
  func.func @transform_2(%arg0: i32) -> (i32, i32) {
    %c0_i32 = arith.constant 0 : i32
    %c0_i32_0 = arith.constant 0 : i32
    %c0_i32_1 = arith.constant 0 : i32
    return %c0_i32, %c0_i32_0 : i32, i32
  }
  func.func @transform_3(%arg0: i32) -> (i32, i32) {
    %c0_i32 = arith.constant 0 : i32
    %c0_i32_0 = arith.constant 0 : i32
    %c0_i32_1 = arith.constant 0 : i32
    return %c0_i32, %c0_i32_0 : i32, i32
  }
  func.func @transform_4(%arg0: i32) -> (i32, i32) {
    %c0_i32 = arith.constant 0 : i32
    %c0_i32_0 = arith.constant 0 : i32
    %c0_i32_1 = arith.constant 0 : i32
    return %c0_i32, %c0_i32_0 : i32, i32
  }
  func.func @transform_5(%arg0: i32) -> (i32, i32) {
    %c0_i32 = arith.constant 0 : i32
    %c0_i32_0 = arith.constant 0 : i32
    return %arg0, %c0_i32 : i32, i32
  }
}

</mosaic_0001>

<llo_original>
// kernel: tpu_custom_call.1
$region0: #{tpu_custom_call.1}
  #allocation0 [shape = 'u32[]', space=smem, size = 0x4, offset = 0x4, fixed_abs, tag = 'smem constant byte address 0x4 - core index']
  #allocation1 [shape = 'u32[72,128]{1,0:T(1,128)}', space=vmem, size = 0x9000, scoped, tag = 'internal scratch']
  %s0 = inlined_call_operand.hbm [shape: f32[16,32], index: 0, kind: input, shape index: {}]
  %s1 = inlined_call_operand.hbm [shape: bf16[32,192], index: 1, kind: input, shape index: {}]
  %s2 = inlined_call_operand.hbm [shape: f32[1,192], index: 2, kind: input, shape index: {}]
  %s3 = inlined_call_operand.hbm [shape: bf16[64,128], index: 3, kind: input, shape index: {}]
  %s4 = inlined_call_operand.vmem [shape: f32[1,128], index: 4, kind: input, shape index: {}]
  %s5 = inlined_call_operand.hbm [shape: f32[16,128], index: 5, kind: output, shape index: {}]
  %s6 = sld [smem:[#allocation0]]
  $region69: #{tpu_custom_call.1} parent=0
    _
  %s8 = ssub.s32 1, %s6
  %s9 = scalar_select 0, %s8, %s6
  $region1: #{tpu_custom_call.1} parent=0
    #allocation2 [shape = 'u8[8192]{0}', space=vmem, size = 0x2000, scoped, tag = 'input window, operand 0']
    #allocation3 [shape = 's32[2]{0}', space=sflag, size = 0x8, scoped, tag = 'scoped memory for tpu_custom_call.1']
    #allocation4 [shape = 's32[2]{0}', space=sflag, size = 0x8, scoped, tag = 'scoped memory for tpu_custom_call.1']
    #allocation5 [shape = 'u8[16384]{0}', space=vmem, size = 0x4000, scoped, tag = 'input window, operand 1, single buffered']
    #allocation6 [shape = 's32[1]{0}', space=sflag, size = 0x4, scoped, tag = 'scoped memory for tpu_custom_call.1']
    #allocation7 [shape = 'u8[1024]{0}', space=vmem, size = 0x400, scoped, tag = 'input window, operand 2, single buffered']
    #allocation8 [shape = 'u8[16384]{0}', space=vmem, size = 0x4000, scoped, tag = 'input window, operand 3, single buffered']
    #allocation9 [shape = 's32[1]{0}', space=sflag, size = 0x4, scoped, tag = 'scoped memory for tpu_custom_call.1']
    #allocation10 [shape = 'u8[8192]{0}', space=vmem, size = 0x2000, scoped, tag = 'output window, operand 0']
    %10 = vsyncpa [#allocation3], 0
    %s11 = scalar_lea.sflag [#allocation3], 1
    %12 = vsyncpa %s11, 0
    %13 = vsyncpa [#allocation6], 0
    %14 = vsyncpa [#allocation9], 0
    %15 = vsyncpa [#allocation4], 0
    %s16 = scalar_lea.sflag [#allocation4], 1
    %17 = vsyncpa %s16, 0
    loop: start=0, step=1, limit=4
    $region2: #{tpu_custom_call.1} parent=1 // loop_pre_header
      _
    $region3: #{tpu_custom_call.1} parent=1 // loop_header
      %s19 = sphi 0, %s23
      %p20 = scmp.ge.s32.totalorder %s19, 4
      %s29 = sphi 0, %s31
      %s32 = sphi 0, %s29
      %s33 = sphi 0, %s32
      %s49 = sphi 0, %s33
      %s53 = sphi 0, %s53
      %s55 = sphi 0, %s53
      %s56 = sphi 0, %s55
      %s70 = sphi 0, %s56
      %s74 = sphi 0, %s74
      %s76 = sphi 0, %s74
      %s77 = sphi 0, %s76
      %s91 = sphi 0, %s77
      %s95 = sphi 0, %s95
      %s97 = sphi 0, %s95
      %s98 = sphi 0, %s97
      %s112 = sphi 0, %s98
      %s116 = sphi 0, %s116
      %s118 = sphi 0, %s116
      %s119 = sphi 0, %s118
      %s133 = sphi 0, %s119
      %s139 = sphi 0, %s141
      %s142 = sphi 0, %s139
      %s143 = sphi 0, %s142
      %s159 = sphi 0, %s143
    $region4: #{tpu_custom_call.1} parent=1 // loop_header_branch
      %22 = sbr.rel (%p20) target = $region8
    $region5: #{tpu_custom_call.1} parent=1 // loop_body
      %s24 = ssub.s32 %s19, 1
      %s25 = ssub.s32 %s19, 2
      %s26 = sadd.s32 %s19, 1
      %s27 = ssub.s32 %s19, %s26
      %p28 = scmp.eq.s32.totalorder %s27, 0
      %s30 = sadd.s32 %s29, 1
      %s31 = scalar_select %p28, %s29, %s30
      %p34 = pneg %p28
      %p35 = scmp.eq.s32.totalorder %s19, 1
      %p36 = por %p34, %p35
      %p37 = scmp.ne.s32.totalorder %s29, %s32
      %p38 = scmp.eq.s32.totalorder %s19, 0
      %p39 = por %p37, %p38
      %p40 = scmp.ne.s32.totalorder %s29, %s32
      %p41 = scmp.eq.s32.totalorder %s24, 1
      %p42 = por %p40, %p41
      %p43 = scmp.ne.s32.totalorder %s32, %s33
      %p44 = scmp.eq.s32.totalorder %s24, 0
      %p45 = por %p43, %p44
      %p46 = scmp.ne.s32.totalorder %s32, %s33
      %p47 = scmp.eq.s32.totalorder %s25, 1
      %p48 = por %p46, %p47
      %p50 = scmp.ne.s32.totalorder %s33, %s49
      %p51 = scmp.eq.s32.totalorder %s25, 0
      %p52 = por %p50, %p51
      %s54 = sadd.s32 %s53, 1
      %p57 = scmp.eq.s32.totalorder %s19, 1
      %p58 = scmp.ne.s32.totalorder %s53, %s55
      %p59 = scmp.eq.s32.totalorder %s19, 0
      %p60 = por %p58, %p59
      %p61 = scmp.ne.s32.totalorder %s53, %s55
      %p62 = scmp.eq.s32.totalorder %s24, 1
      %p63 = por %p61, %p62
      %p64 = scmp.ne.s32.totalorder %s55, %s56
      %p65 = scmp.eq.s32.totalorder %s24, 0
      %p66 = por %p64, %p65
      %p67 = scmp.ne.s32.totalorder %s55, %s56
      %p68 = scmp.eq.s32.totalorder %s25, 1
      %p69 = por %p67, %p68
      %p71 = scmp.ne.s32.totalorder %s56, %s70
      %p72 = scmp.eq.s32.totalorder %s25, 0
      %p73 = por %p71, %p72
      %s75 = sadd.s32 %s74, 1
      %p78 = scmp.eq.s32.totalorder %s19, 1
      %p79 = scmp.ne.s32.totalorder %s74, %s76
      %p80 = scmp.eq.s32.totalorder %s19, 0
      %p81 = por %p79, %p80
      %p82 = scmp.ne.s32.totalorder %s74, %s76
      %p83 = scmp.eq.s32.totalorder %s24, 1
      %p84 = por %p82, %p83
      %p85 = scmp.ne.s32.totalorder %s76, %s77
      %p86 = scmp.eq.s32.totalorder %s24, 0
      %p87 = por %p85, %p86
      %p88 = scmp.ne.s32.totalorder %s76, %s77
      %p89 = scmp.eq.s32.totalorder %s25, 1
      %p90 = por %p88, %p89
      %p92 = scmp.ne.s32.totalorder %s77, %s91
      %p93 = scmp.eq.s32.totalorder %s25, 0
      %p94 = por %p92, %p93
      %s96 = sadd.s32 %s95, 1
      %p99 = scmp.eq.s32.totalorder %s19, 1
      %p100 = scmp.ne.s32.totalorder %s95, %s97
      %p101 = scmp.eq.s32.totalorder %s19, 0
      %p102 = por %p100, %p101
      %p103 = scmp.ne.s32.totalorder %s95, %s97
      %p104 = scmp.eq.s32.totalorder %s24, 1
      %p105 = por %p103, %p104
      %p106 = scmp.ne.s32.totalorder %s97, %s98
      %p107 = scmp.eq.s32.totalorder %s24, 0
      %p108 = por %p106, %p107
      %p109 = scmp.ne.s32.totalorder %s97, %s98
      %p110 = scmp.eq.s32.totalorder %s25, 1
      %p111 = por %p109, %p110
      %p113 = scmp.ne.s32.totalorder %s98, %s112
      %p114 = scmp.eq.s32.totalorder %s25, 0
      %p115 = por %p113, %p114
      %s117 = sadd.s32 %s116, 1
      %p120 = scmp.eq.s32.totalorder %s19, 1
      %p121 = scmp.ne.s32.totalorder %s116, %s118
      %p122 = scmp.eq.s32.totalorder %s19, 0
      %p123 = por %p121, %p122
      %p124 = scmp.ne.s32.totalorder %s116, %s118
      %p125 = scmp.eq.s32.totalorder %s24, 1
      %p126 = por %p124, %p125
      %p127 = scmp.ne.s32.totalorder %s118, %s119
      %p128 = scmp.eq.s32.totalorder %s24, 0
      %p129 = por %p127, %p128
      %p130 = scmp.ne.s32.totalorder %s118, %s119
      %p131 = scmp.eq.s32.totalorder %s25, 1
      %p132 = por %p130, %p131
      %p134 = scmp.ne.s32.totalorder %s119, %s133
      %p135 = scmp.eq.s32.totalorder %s25, 0
      %p136 = por %p134, %p135
      %s137 = ssub.s32 %s19, %s26
      %p138 = scmp.eq.s32.totalorder %s137, 0
      %s140 = sadd.s32 %s139, 1
      %s141 = scalar_select %p138, %s139, %s140
      %p144 = pneg %p138
      %p145 = scmp.eq.s32.totalorder %s19, 1
      %p146 = por %p144, %p145
      %p147 = scmp.ne.s32.totalorder %s139, %s142
      %p148 = scmp.eq.s32.totalorder %s19, 0
      %p149 = por %p147, %p148
      %p150 = scmp.ne.s32.totalorder %s139, %s142
      %p151 = scmp.eq.s32.totalorder %s24, 1
      %p152 = por %p150, %p151
      %p153 = scmp.ne.s32.totalorder %s142, %s143
      %p154 = scmp.eq.s32.totalorder %s24, 0
      %p155 = por %p153, %p154
      %p156 = scmp.ne.s32.totalorder %s142, %s143
      %p157 = scmp.eq.s32.totalorder %s25, 1
      %p158 = por %p156, %p157
      %p160 = scmp.ne.s32.totalorder %s143, %s159
      %p161 = scmp.eq.s32.totalorder %s25, 0
      %p162 = por %p160, %p161
      %p163 = scmp.le.s32.totalorder 1, %s19
      %p164 = scmp.lt.s32.totalorder %s19, 3
      %p165 = pnand %p163, %p164
      %p166 = pneg %p165
      // Predicated region
      $region9: #{tpu_custom_call.1} parent=5 // pred_check
        _
      $region10: #{tpu_custom_call.1} parent=5 // pred_check_branch
        %168 = sbr.rel (%p165) target = $region12
      $region11: #{tpu_custom_call.1} parent=5 // pred_region
        %s169 = ssub.s32 %s19, 1
        // Predicated region
        $region13: #{tpu_custom_call.1} parent=11 // pred_check
          %p170 = pneg %p66
        $region14: #{tpu_custom_call.1} parent=11 // pred_check_branch
          %172 = sbr.rel (%p170) target = $region16
        $region15: #{tpu_custom_call.1} parent=11 // pred_region
          %174 = vsyncadd [#allocation6], 0
          %s175 = sshll.u32 %s1, 4
          %s176 = int_to_ptr.hbm [resolvable:$true] %s175
          %s177 = sshll.u32 [#allocation5], 4
          %s178 = int_to_ptr.vmem [resolvable:$true] %s177
          %183 = dma.hbm_to_vmem [thread:$0]  %s176, 512, %s178, [#allocation6], 128, 128, 8
        $region16: #{tpu_custom_call.1} parent=11 // pred_fallthru
          _
        // Predicated region
        $region17: #{tpu_custom_call.1} parent=11 // pred_check
          %p184 = pneg %p87
        $region18: #{tpu_custom_call.1} parent=11 // pred_check_branch
          %186 = sbr.rel (%p184) target = $region20
        $region19: #{tpu_custom_call.1} parent=11 // pred_region
          %188 = vsyncadd [#allocation6], 0
          %s190 = sshll.u32 %s2, 4
          %s191 = int_to_ptr.hbm [resolvable:$true] %s190
          %s192 = sshll.u32 [#allocation7], 4
          %s193 = int_to_ptr.vmem [resolvable:$true] %s192
          %195 = dma.hbm_to_vmem [thread:$0]  %s191, 32, %s193, [#allocation6]
        $region20: #{tpu_custom_call.1} parent=11 // pred_fallthru
          _
        // Predicated region
        $region21: #{tpu_custom_call.1} parent=11 // pred_check
          %p196 = pneg %p108
        $region22: #{tpu_custom_call.1} parent=11 // pred_check_branch
          %198 = sbr.rel (%p196) target = $region24
        $region23: #{tpu_custom_call.1} parent=11 // pred_region
          %200 = vsyncadd [#allocation9], 0
          %s201 = sshll.u32 %s3, 4
          %s202 = int_to_ptr.hbm [resolvable:$true] %s201
          %s203 = sshll.u32 [#allocation8], 4
          %s204 = int_to_ptr.vmem [resolvable:$true] %s203
          %209 = dma.hbm_to_vmem [thread:$0]  %s202, 512, %s204, [#allocation9], 64, 64, 4
        $region24: #{tpu_custom_call.1} parent=11 // pred_fallthru
          _
        // Predicated region
        $region25: #{tpu_custom_call.1} parent=11 // pred_check
          %p210 = pneg %p129
        $region26: #{tpu_custom_call.1} parent=11 // pred_check_branch
          %212 = sbr.rel (%p210) target = $region28
        $region27: #{tpu_custom_call.1} parent=11 // pred_region
          _
        $region28: #{tpu_custom_call.1} parent=11 // pred_fallthru
          _
      $region12: #{tpu_custom_call.1} parent=5 // pred_fallthru
        _
      %p213 = scmp.lt.s32.totalorder %s19, 2
      // Predicated region
      $region29: #{tpu_custom_call.1} parent=5 // pred_check
        %p214 = pneg %p213
      $region30: #{tpu_custom_call.1} parent=5 // pred_check_branch
        %216 = sbr.rel (%p214) target = $region32
      $region31: #{tpu_custom_call.1} parent=5 // pred_region
        // Predicated region
        $region33: #{tpu_custom_call.1} parent=31 // pred_check
          %p217 = pneg %p39
        $region34: #{tpu_custom_call.1} parent=31 // pred_check_branch
          %219 = sbr.rel (%p217) target = $region36
        $region35: #{tpu_custom_call.1} parent=31 // pred_region
          %s220 = sand.u32 %s29, 1
          %s221 = scalar_lea.sflag [#allocation3], %s220
          %s222 = sand.u32 %s29, 1
          %s223 = smul.addr %s222, 8
          %s224 = scalar_lea.vmem [#allocation2], %s223
          %226 = vsyncadd %s221, 0
          %s227 = smul.addr %s19, 8
          %s228 = scalar_lea.hbm %s0, %s227
          %s230 = sshll.u32 %s228, 4
          %s231 = int_to_ptr.hbm [resolvable:$true] %s230
          %s232 = sshll.u32 %s224, 4
          %s233 = int_to_ptr.vmem [resolvable:$true] %s232
          %235 = dma.hbm_to_vmem [thread:$0]  %s231, 128, %s233, %s221
        $region36: #{tpu_custom_call.1} parent=31 // pred_fallthru
          _
      $region32: #{tpu_custom_call.1} parent=5 // pred_fallthru
        _
      %p236 = scmp.le.s32.totalorder 1, %s19
      %p237 = scmp.lt.s32.totalorder %s19, 3
      %p238 = pnand %p236, %p237
      %p239 = pneg %p238
      // Predicated region
      $region37: #{tpu_custom_call.1} parent=5 // pred_check
        _
      $region38: #{tpu_custom_call.1} parent=5 // pred_check_branch
        %241 = sbr.rel (%p238) target = $region40
      $region39: #{tpu_custom_call.1} parent=5 // pred_region
        %s242 = ssub.s32 %s19, 1
        %s243 = sand.u32 %s32, 1
        %s244 = scalar_lea.sflag [#allocation3], %s243
        %s245 = sand.u32 %s32, 1
        %s246 = smul.addr %s245, 8
        %s247 = scalar_lea.vmem [#allocation2], %s246
        // Predicated region
        $region41: #{tpu_custom_call.1} parent=39 // pred_check
          %p248 = pneg %p45
        $region42: #{tpu_custom_call.1} parent=39 // pred_check_branch
          %250 = sbr.rel (%p248) target = $region44
        $region43: #{tpu_custom_call.1} parent=39 // pred_region
          %252 = dma.done %s244, 128
        $region44: #{tpu_custom_call.1} parent=39 // pred_fallthru
          _
        // Predicated region
        $region45: #{tpu_custom_call.1} parent=39 // pred_check
          %p253 = pneg %p66
        $region46: #{tpu_custom_call.1} parent=39 // pred_check_branch
          %255 = sbr.rel (%p253) target = $region48
        $region47: #{tpu_custom_call.1} parent=39 // pred_region
          %257 = dma.done [#allocation6], 512
        $region48: #{tpu_custom_call.1} parent=39 // pred_fallthru
          _
        // Predicated region
        $region49: #{tpu_custom_call.1} parent=39 // pred_check
          %p258 = pneg %p87
        $region50: #{tpu_custom_call.1} parent=39 // pred_check_branch
          %260 = sbr.rel (%p258) target = $region52
        $region51: #{tpu_custom_call.1} parent=39 // pred_region
          %262 = dma.done [#allocation6], 32
        $region52: #{tpu_custom_call.1} parent=39 // pred_fallthru
          _
        // Predicated region
        $region53: #{tpu_custom_call.1} parent=39 // pred_check
          %p263 = pneg %p108
        $region54: #{tpu_custom_call.1} parent=39 // pred_check_branch
          %265 = sbr.rel (%p263) target = $region56
        $region55: #{tpu_custom_call.1} parent=39 // pred_region
          %267 = dma.done [#allocation9], 512
        $region56: #{tpu_custom_call.1} parent=39 // pred_fallthru
          _
        %s268 = sand.u32 %s32, 1
        %s269 = scalar_lea.sflag [#allocation3], %s268
        %s270 = sand.u32 %s32, 1
        %s271 = smul.addr %s270, 8
        %s272 = scalar_lea.vmem [#allocation2], %s271
        %p273 = pneg %p45
        %p274 = pneg %p42
        %p275 = pneg %p66
        %p276 = pneg %p63
        %p277 = pneg %p87
        %p278 = pneg %p84
        %p279 = pneg %p108
        %p280 = pneg %p105
        %p281 = pneg %p129
        %p282 = pneg %p126
        %p283 = pneg %p155
        %p284 = pneg %p152
        %s285 = sand.u32 %s142, 1
        %s286 = scalar_lea.sflag [#allocation4], %s285
        %s287 = sand.u32 %s142, 1
        %s288 = smul.addr %s287, 8
        %s289 = scalar_lea.vmem [#allocation10], %s288
        %v291 = vld [vmem:[%s247] sm:$0xff]
        %v292 = vpack.c.bf16 %v291, %v291
        %v293 = vld [vmem:[#allocation5] sm:$0xff]
        %v294 = vld [vmem:[#allocation5 + $0x8] sm:$0xff]
        %v295 = vld [vmem:[#allocation5 + $0x10] sm:$0xff]
        %v296 = vld [vmem:[#allocation5 + $0x18] sm:$0xff]
        %v297 = vld [vmem:[#allocation7] sm:$0x3]
        %v299 = vperm.slane %v297, 0
        %v300 = vperm.slane %v297, 1
        %v307 = vunpack.c.l.b16 %v293
        %v308 = vunpack.c.h.b16 %v293
        %v309 = vunpack.c.l.b16 %v294
        %v310 = vunpack.c.h.b16 %v294
        %v311 = vunpack.c.l.b16 %v295
        %v312 = vunpack.c.h.b16 %v295
        %v313 = vunpack.c.l.b16 %v296
        %v314 = vunpack.c.h.b16 %v296
        %v315 = vpack.c.b16 %v309, %v307
        %v316 = vpack.c.b16 %v310, %v308
        %v317 = vpack.c.b16 %v313, %v311
        %v318 = vpack.c.b16 %v314, %v312
        %vm323 = vcmask 261120
        %v325 = vsel %vm323, %v292, 0
        %327 = vmatpush.bf16.msra.mxu0 0
        %328 = vmatpush.bf16.msra.mxu0 0
        %329 = vmatpush.bf16.msra.mxu0 0
        %330 = vmatpush.bf16.msra.mxu0 0
        %331 = vmatpush.bf16.msra.mxu0 0
        %332 = vmatpush.bf16.msra.mxu0 0
        %333 = vmatpush.bf16.msra.mxu0 %v317
        %334 = vmatpush.bf16.msra.mxu0 %v315
        %335 = vmatmul.bf16.gmra.mxu0 %v325
        %v336 = vpop.f32.mrf.mxu0
        %v337 = vadd.f32 %v299, %v336
        %v338 = vpop.f32.mrf.mxu0
        %339 = vdwg.mxu0
        %340 = vmatpush.bf16.msra.mxu0 0
        %341 = vmatpush.bf16.msra.mxu0 0
        %342 = vmatpush.bf16.msra.mxu0 0
        %343 = vmatpush.bf16.msra.mxu0 0
        %344 = vmatpush.bf16.msra.mxu0 0
        %345 = vmatpush.bf16.msra.mxu0 0
        %346 = vmatpush.bf16.msra.mxu0 %v318
        %347 = vmatpush.bf16.msra.mxu0 %v316
        %348 = vmatmul.bf16.gmra.mxu0 %v325
        %v349 = vpop.f32.mrf.mxu0
        %v350 = vadd.f32 %v300, %v349
        %v351 = vpop.f32.mrf.mxu0
        %352 = vdwg.mxu0
        %vm353 = vcmask 1048064
        %v354 = vsel %vm353, %v337, -inf
        %355 = vmax.xlane.f32.xlu0 %v354
        %v356 = vpop.xlane.xlu0 %355
        %v357 = vsub.f32 %v337, %v356
        %v358 = vmul.f32 %v357, 1.442695
        %v359 = vpow.pop %v358
        %361 = vrot.lane.b32.xlu0 %v359, 64
        %v362 = vpop.permute.xlu0 %361
        %vm364 = vcmask 523264
        %v365 = vsel %vm364, %v362, 0.0
        %366 = vadd.xlane.f32.xlu0 %v365
        %v367 = vpop.xlane.xlu0 %366
        %v368 = vrcp.pop %v367
        %v369 = vmul.f32 %v359, %v368
        %v370 = vxor.u32 %v337, 2147483648
        %v371 = vmul.f32 %v370, 1.442695
        %v372 = vpow.pop %v371
        %v373 = vadd.f32 %v372, 1.0
        %v374 = vrcp.pop %v373
        %v375 = vmul.f32 %v373, %v374
        %v376 = vsub.f32 1.0, %v375
        %v377 = vmul.f32 %v374, %v376
        %v378 = vadd.f32 %v374, %v377
        %vm379 = vweird.f32 %v373
        %vm380 = vweird.f32 %v374
        %vm381 = vmor %vm379, %vm380
        %v382 = vsel %vm381, %v374, %v378
        %v383 = vand.u32 2147483647, %v373
        %vm384 = vcmp.eq.f32.partialorder %v383, 8.507059e+37
        %v385 = vand.u32 %v373, 2147483648
        %v386 = vor.u32 1.1754944e-38, %v385
        %v387 = vsel %vm384, %v386, %v382
        %v388 = vmul.f32 1.0, %v387
        %390 = vrot.lane.b32.xlu0 %v369, 64
        %v391 = vpop.permute.xlu0 %390
        %v393 = vmul.f32 %v388, %v391
        %v394 = vmul.f32 %v393, %v350
        %v395 = vpack.c.bf16 %v394, %v394
        %v396 = vld [vmem:[#allocation8] sm:$0xf]
        %v397 = vld [vmem:[#allocation8 + $0x4] sm:$0xf]
        %v398 = vld [vmem:[#allocation8 + $0x8] sm:$0xf]
        %v399 = vld [vmem:[#allocation8 + $0xc] sm:$0xf]
        %v400 = vld [vmem:[#allocation8 + $0x10] sm:$0xf]
        %v401 = vld [vmem:[#allocation8 + $0x14] sm:$0xf]
        %v402 = vld [vmem:[#allocation8 + $0x18] sm:$0xf]
        %v403 = vld [vmem:[#allocation8 + $0x1c] sm:$0xf]
        %v404 = vld [vmem:[%s4] sm:$0x1]
        %v406 = vperm.slane %v404, 0
        %v416 = vunpack.c.l.b16 %v396
        %v417 = vunpack.c.l.b16 %v397
        %v418 = vunpack.c.l.b16 %v398
        %v419 = vunpack.c.l.b16 %v399
        %v420 = vunpack.c.l.b16 %v400
        %v421 = vunpack.c.l.b16 %v401
        %v422 = vunpack.c.l.b16 %v402
        %v423 = vunpack.c.l.b16 %v403
        %v424 = vpack.c.b16 %v417, %v416
        %v425 = vpack.c.b16 %v419, %v418
        %v426 = vpack.c.b16 %v421, %v420
        %v427 = vpack.c.b16 %v423, %v422
        %v433 = vsel %vm364, %v395, 0
        %435 = vmatpush.bf16.msra.mxu0 0
        %436 = vmatpush.bf16.msra.mxu0 0
        %437 = vmatpush.bf16.msra.mxu0 0
        %438 = vmatpush.bf16.msra.mxu0 0
        %439 = vmatpush.bf16.msra.mxu0 %v427
        %440 = vmatpush.bf16.msra.mxu0 %v426
        %441 = vmatpush.bf16.msra.mxu0 %v425
        %442 = vmatpush.bf16.msra.mxu0 %v424
        %443 = vmatmul.bf16.gmra.mxu0 %v433
        %v444 = vpop.f32.mrf.mxu0
        %v445 = vadd.f32 %v406, %v444
        %v446 = vpop.f32.mrf.mxu0
        %447 = vdwg.mxu0
        %448 = vst [vmem:[%s289] sm:$0xff] %v445
        %s449 = sand.u32 %s142, 1
        %s450 = scalar_lea.sflag [#allocation4], %s449
        %s451 = sand.u32 %s142, 1
        %s452 = smul.addr %s451, 8
        %s453 = scalar_lea.vmem [#allocation10], %s452
        // Predicated region
        $region57: #{tpu_custom_call.1} parent=39 // pred_check
          %p454 = pneg %p152
        $region58: #{tpu_custom_call.1} parent=39 // pred_check_branch
          %456 = sbr.rel (%p454) target = $region60
        $region59: #{tpu_custom_call.1} parent=39 // pred_region
          %458 = vsyncadd %s450, 0
          %s459 = smul.addr %s24, 8
          %s460 = scalar_lea.hbm %s5, %s459
          %s462 = sshll.u32 %s453, 4
          %s463 = int_to_ptr.vmem [resolvable:$true] %s462
          %s464 = sshll.u32 %s460, 4
          %s465 = int_to_ptr.hbm [resolvable:$true] %s464
          %467 = dma.vmem_to_hbm [thread:$0]  %s463, 128, %s465, %s450
        $region60: #{tpu_custom_call.1} parent=39 // pred_fallthru
          _
      $region40: #{tpu_custom_call.1} parent=5 // pred_fallthru
        _
      %p468 = scmp.le.s32.totalorder 2, %s19
      // Predicated region
      $region61: #{tpu_custom_call.1} parent=5 // pred_check
        %p469 = pneg %p468
      $region62: #{tpu_custom_call.1} parent=5 // pred_check_branch
        %471 = sbr.rel (%p469) target = $region64
      $region63: #{tpu_custom_call.1} parent=5 // pred_region
        %s472 = ssub.s32 %s19, 2
        // Predicated region
        $region65: #{tpu_custom_call.1} parent=63 // pred_check
          %p473 = pneg %p158
        $region66: #{tpu_custom_call.1} parent=63 // pred_check_branch
          %475 = sbr.rel (%p473) target = $region68
        $region67: #{tpu_custom_call.1} parent=63 // pred_region
          %s476 = sand.u32 %s143, 1
          %s477 = scalar_lea.sflag [#allocation4], %s476
          %s478 = sand.u32 %s143, 1
          %s479 = smul.addr %s478, 8
          %s480 = scalar_lea.vmem [#allocation10], %s479
          %482 = dma.done %s477, 128
        $region68: #{tpu_custom_call.1} parent=63 // pred_fallthru
          _
      $region64: #{tpu_custom_call.1} parent=5 // pred_fallthru
        _
    $region6: #{tpu_custom_call.1} parent=1 // loop_footer
      %s23 = sadd.s32 1, %s19
    $region7: #{tpu_custom_call.1} parent=1 // loop_footer_branch
      %18 = sbr.rel target = $region3
    $region8: #{tpu_custom_call.1} parent=1 // loop_exit
      _
    %483 = vsyncpa [#allocation3], 1
    %s484 = scalar_lea.sflag [#allocation3], 1
    %485 = vsyncpa %s484, 1
    %486 = vsyncpa [#allocation6], 1
    %487 = vsyncpa [#allocation9], 1
    %488 = vsyncpa [#allocation4], 1
    %s489 = scalar_lea.sflag [#allocation4], 1
    %490 = vsyncpa %s489, 1

</llo_original>
